<compile_context>
chip_gen: v5e
topology: v5e:2x2
jax: 0.10.0
libtpu: 0.0.40
codegen_flags: <defaults>
</compile_context>

<pallas_src>
import functools

import jax
import jax.numpy as jnp
from jax.experimental import pallas as pl
from jax.experimental.pallas import tpu as pltpu

_LANE = 128
_H1, _H2, _H3 = 256, 128, 64          # PyTorch module hidden sizes
_H3_PAD = _LANE                        # 64-wide hidden padded to one full lane


def _round_up(v, m):
    return ((v + m - 1) // m) * m


def _bf16_activation_ok():
    """bf16 tanh only where the VPU/EUP has a bf16 path (v6e/v7x, not <=v5e)."""
    try:
        kind = jax.devices()[0].device_kind.lower()
    except Exception:
        return False
    for old in ("v2", "v3", "v4", "v5"):
        if old in kind:
            return False
    return True


def _mlp_kernel(x_ref,
                w1_ref, b1_ref,
                w2_ref, b2_ref,
                w3_ref, b3_ref,
                w4_ref, b4_ref,
                o_ref, *, num_cls, bf16_act):
    # f32 -> bf16 cast happens in-kernel: x is read once from HBM at f32.
    x = x_ref[...].astype(jnp.bfloat16)

    def act(h_f32):
        # f32 MXU accumulate + f32 bias add; tanh in bf16 on v6e/v7x (bf16 EUP),
        # f32 tanh on v5e. Either way the next MXU dot consumes bf16.
        if bf16_act:
            return jnp.tanh(h_f32.astype(jnp.bfloat16))
        return jnp.tanh(h_f32).astype(jnp.bfloat16)

    # TODO(synk): dropout is identity here (eval-mode semantics); training-mode
    # dropout would need pltpu.prng_seed + pltpu.prng_random_bits + mask/scale.
    h = act(jnp.dot(x, w1_ref[...], preferred_element_type=jnp.float32)
            + b1_ref[...])
    h = act(jnp.dot(h, w2_ref[...], preferred_element_type=jnp.float32)
            + b2_ref[...])
    h = act(jnp.dot(h, w3_ref[...], preferred_element_type=jnp.float32)
            + b3_ref[...])
    logits = (jnp.dot(h, w4_ref[...], preferred_element_type=jnp.float32)
              + b4_ref[...])
    # Only the real logit columns go to HBM; padded columns stay in VMEM.
    o_ref[...] = logits[:, :num_cls].astype(o_ref.dtype)


def prepare_params(params):
    """One-time param prep: lane-pad layers 3/4, cast MXU weights to bf16.

    Expects init_params layout: w_i [in,out] f32, b_i [1,out] f32.
    Zero padding is numerically inert (zero w4 rows kill padded activations).
    """
    num_cls = int(params["w4"].shape[1])
    out_pad = max(_LANE, _round_up(num_cls, _LANE))

    w3 = jnp.zeros((_H2, _H3_PAD), jnp.float32).at[:, :_H3].set(params["w3"])
    b3 = jnp.zeros((1, _H3_PAD), jnp.float32).at[:, :_H3].set(params["b3"])
    w4 = jnp.zeros((_H3_PAD, out_pad), jnp.float32)
    w4 = w4.at[:_H3, :num_cls].set(params["w4"])
    b4 = jnp.zeros((1, out_pad), jnp.float32).at[:, :num_cls].set(params["b4"])

    return {
        "w1": params["w1"].astype(jnp.bfloat16),
        "b1": params["b1"].astype(jnp.float32),
        "w2": params["w2"].astype(jnp.bfloat16),
        "b2": params["b2"].astype(jnp.float32),
        "w3": w3.astype(jnp.bfloat16),
        "b3": b3,
        "w4": w4.astype(jnp.bfloat16),
        "b4": b4,
        "num_cls": num_cls,
    }


def discrete_classifier_forward(x, prepped, *, tile_m=1024):
    """x: [B, F] float32. prepped: output of prepare_params()."""
    B, F = x.shape
    num_cls = prepped["num_cls"]
    out_pad = prepped["w4"].shape[1]
    bf16_act = _bf16_activation_ok()

    # --- batch tiling ------------------------------------------------------
    # Tiles rounded to 16 rows (bf16 sublane packing of the activations). When
    # the batch allows, halve the tile so the "parallel" axis has >=2 grid
    # steps and both v7x TensorCores get work.
    tm = min(tile_m, _round_up(B, 16))
    if _round_up(B, 16) >= 32:
        tm = min(tm, _round_up(pl.cdiv(B, 2), 16))
    b_pad = _round_up(B, tm)
    x_p = x if b_pad == B else jnp.pad(x, ((0, b_pad - B), (0, 0)))
    grid = (b_pad // tm,)

    param_order = ("w1", "b1", "w2", "b2", "w3", "b3", "w4", "b4")
    param_arrays = tuple(prepped[k] for k in param_order)
    param_bytes = int(sum(a.size * a.dtype.itemsize for a in param_arrays))

    # Advisory cost estimate so XLA can schedule neighbors around the call.
    flops = 2 * B * (F * _H1 + _H1 * _H2 + _H2 * _H3_PAD + _H3_PAD * out_pad)
    cost = pl.CostEstimate(
        flops=int(flops),
        transcendentals=int(B * (_H1 + _H2 + _H3_PAD)),
        bytes_accessed=int(x.size * 4 + param_bytes + B * num_cls * 4),
    )

    compiler_kwargs = dict(dimension_semantics=("parallel",))
    est_vmem = (2 * tm * F * 4 + 2 * tm * num_cls * 4 + param_bytes
                + tm * (_H1 + _H2 + _H3_PAD + out_pad) * 4)
    if est_vmem > (16 << 20):   # only for very large tiles (v5e 16 MiB default)
        compiler_kwargs["vmem_limit_bytes"] = int(min(2 * est_vmem, 48 << 20))

    kernel = functools.partial(_mlp_kernel, num_cls=num_cls, bf16_act=bf16_act)

    def run(single_buffer_weights):
        def resident(arr):
            # Same block every grid step -> one DMA, stays VMEM-resident.
            kwargs = {}
            if single_buffer_weights and hasattr(pl, "Buffered"):
                kwargs["pipeline_mode"] = pl.Buffered(1)
            return pl.BlockSpec(arr.shape, lambda i: (0, 0), **kwargs)

        in_specs = [pl.BlockSpec((tm, F), lambda i: (i, 0))]
        in_specs += [resident(a) for a in param_arrays]

        return pl.pallas_call(
            kernel,
            out_shape=jax.ShapeDtypeStruct((b_pad, num_cls), jnp.float32),
            grid_spec=pl.GridSpec(
                grid=grid,
                in_specs=in_specs,
                out_specs=pl.BlockSpec((tm, num_cls), lambda i: (i, 0)),
            ),
            compiler_params=pltpu.CompilerParams(**compiler_kwargs),
            cost_estimate=cost,
        )(x_p, *param_arrays)

    try:
        out = run(single_buffer_weights=True)
    except Exception:
        # Fallback if this JAX build rejects pipeline_mode=pl.Buffered(1).
        out = run(single_buffer_weights=False)

    return out[:B]


def init_params(key, num_feature, num_cls=2):
    dims = [(num_feature, _H1), (_H1, _H2), (_H2, _H3), (_H3, num_cls)]
    params = {}
    for idx, (d_in, d_out) in enumerate(dims, start=1):
        key, kw, kb = jax.random.split(key, 3)
        bound = 1.0 / jnp.sqrt(jnp.float32(d_in))  # PyTorch Linear default init
        params[f"w{idx}"] = jax.random.uniform(
            kw, (d_in, d_out), jnp.float32, minval=-bound, maxval=bound
        )
        params[f"b{idx}"] = jax.random.uniform(
            kb, (1, d_out), jnp.float32, minval=-bound, maxval=bound
        )
    return params


def _reference_forward_f32(x, params):
    h = jnp.tanh(x @ params["w1"] + params["b1"])
    h = jnp.tanh(h @ params["w2"] + params["b2"])
    h = jnp.tanh(h @ params["w3"] + params["b3"])
    return h @ params["w4"] + params["b4"]


def _reference_forward_mixed(x, params, bf16_act):
    # Mirrors the kernel numerics: bf16 MXU operands, f32 accumulation + bias,
    # tanh in bf16 (v6e/v7x) or f32 (v5e and older).
    bf = jnp.bfloat16

    def act(h):
        if bf16_act:
            return jnp.tanh(h.astype(bf))
        return jnp.tanh(h).astype(bf)

    h = act(jnp.dot(x.astype(bf), params["w1"].astype(bf),
                    preferred_element_type=jnp.float32) + params["b1"])
    h = act(jnp.dot(h, params["w2"].astype(bf),
                    preferred_element_type=jnp.float32) + params["b2"])
    h = act(jnp.dot(h, params["w3"].astype(bf),
                    preferred_element_type=jnp.float32) + params["b3"])
    return (jnp.dot(h, params["w4"].astype(bf),
                    preferred_element_type=jnp.float32) + params["b4"])


if __name__ == "__main__":
    key = jax.random.PRNGKey(0)
    k_x, k_p = jax.random.split(key)

    B, F, NUM_CLS = 8, 32, 2
    x = jax.random.normal(k_x, (B, F), jnp.float32)
    params = init_params(k_p, F, NUM_CLS)
    prepped = prepare_params(params)

    out = discrete_classifier_forward(x, prepped)
    out = jax.block_until_ready(out)
    assert out.shape == (B, NUM_CLS)

    # Tight check vs a reference with matching mixed precision.
    ref_mixed = _reference_forward_mixed(x, params, _bf16_activation_ok())
    assert jnp.allclose(out, ref_mixed, atol=2e-3, rtol=2e-3), (
        float(jnp.max(jnp.abs(out - ref_mixed))))

    # Loose sanity check vs the pure-f32 reference (bf16 operand rounding).
    ref_f32 = _reference_forward_f32(x, params)
    assert jnp.allclose(out, ref_f32, atol=6e-2, rtol=6e-2), (
        float(jnp.max(jnp.abs(out - ref_f32))))

    print("KERNEL_OK")
</pallas_src>

<mosaic_0001>
module attributes {stable_mosaic.version = 11 : i64} {
  func.func @_mlp_kernel(%arg0: i32, %arg1: memref<16x32xf32, #tpu.memory_space<vmem>>, %arg2: memref<32x256xbf16, #tpu.memory_space<vmem>>, %arg3: memref<1x256xf32, #tpu.memory_space<vmem>>, %arg4: memref<256x128xbf16, #tpu.memory_space<vmem>>, %arg5: memref<1x128xf32, #tpu.memory_space<vmem>>, %arg6: memref<128x128xbf16, #tpu.memory_space<vmem>>, %arg7: memref<1x128xf32, #tpu.memory_space<vmem>>, %arg8: memref<128x128xbf16, #tpu.memory_space<vmem>>, %arg9: memref<1x128xf32, #tpu.memory_space<vmem>>, %arg10: memref<16x2xf32, #tpu.memory_space<vmem>>) attributes {dimension_semantics = [#tpu.dimension_semantics<parallel>], iteration_bounds = array<i64: 1>, scalar_prefetch = 0 : i64, scratch_operands = 0 : i64, tpu.core_type = #tpu.core_type<tc>, window_params = [{transform_indices = @transform_0, window_bounds = array<i64: 16, 32>}, {pipeline_mode = #tpu.pipeline_mode<synchronous>, transform_indices = @transform_1, window_bounds = array<i64: 32, 256>}, {pipeline_mode = #tpu.pipeline_mode<synchronous>, transform_indices = @transform_2, window_bounds = array<i64: 1, 256>}, {pipeline_mode = #tpu.pipeline_mode<synchronous>, transform_indices = @transform_3, window_bounds = array<i64: 256, 128>}, {pipeline_mode = #tpu.pipeline_mode<synchronous>, transform_indices = @transform_4, window_bounds = array<i64: 1, 128>}, {pipeline_mode = #tpu.pipeline_mode<synchronous>, transform_indices = @transform_5, window_bounds = array<i64: 128, 128>}, {pipeline_mode = #tpu.pipeline_mode<synchronous>, transform_indices = @transform_6, window_bounds = array<i64: 1, 128>}, {pipeline_mode = #tpu.pipeline_mode<synchronous>, transform_indices = @transform_7, window_bounds = array<i64: 128, 128>}, {pipeline_mode = #tpu.pipeline_mode<synchronous>, transform_indices = @transform_8, window_bounds = array<i64: 1, 128>}, {transform_indices = @transform_9, window_bounds = array<i64: 16, 2>}]} {
    %c0 = arith.constant 0 : index
    %c0_0 = arith.constant 0 : index
    %0 = vector.load %arg1[%c0, %c0_0] : memref<16x32xf32, #tpu.memory_space<vmem>>, vector<16x32xf32>
    %1 = arith.truncf %0 : vector<16x32xf32> to vector<16x32xbf16>
    %c0_1 = arith.constant 0 : index
    %c0_2 = arith.constant 0 : index
    %2 = vector.load %arg2[%c0_1, %c0_2] : memref<32x256xbf16, #tpu.memory_space<vmem>>, vector<32x256xbf16>
    %cst = arith.constant dense<0.000000e+00> : vector<16x256xf32>
    %3 = tpu.matmul %1, %2, %cst {dimension_numbers = #tpu.dot_dimension_numbers<[1], [0], [0], [1], [0, 0, 1, 1], [], []>} : vector<16x32xbf16>, vector<32x256xbf16>, vector<16x256xf32> -> vector<16x256xf32>
    %c0_3 = arith.constant 0 : index
    %c0_4 = arith.constant 0 : index
    %4 = vector.load %arg3[%c0_3, %c0_4] : memref<1x256xf32, #tpu.memory_space<vmem>>, vector<1x256xf32>
    %5 = vector.broadcast %4 : vector<1x256xf32> to vector<16x256xf32>
    %6 = arith.addf %3, %5 : vector<16x256xf32>
    %7 = arith.truncf %6 : vector<16x256xf32> to vector<16x256xbf16>
    %8 = math.tanh %7 : vector<16x256xbf16>
    %c0_5 = arith.constant 0 : index
    %c0_6 = arith.constant 0 : index
    %9 = vector.load %arg4[%c0_5, %c0_6] : memref<256x128xbf16, #tpu.memory_space<vmem>>, vector<256x128xbf16>
    %cst_7 = arith.constant dense<0.000000e+00> : vector<16x128xf32>
    %10 = tpu.matmul %8, %9, %cst_7 {dimension_numbers = #tpu.dot_dimension_numbers<[1], [0], [0], [1], [0, 0, 1, 1], [], []>} : vector<16x256xbf16>, vector<256x128xbf16>, vector<16x128xf32> -> vector<16x128xf32>
    %c0_8 = arith.constant 0 : index
    %c0_9 = arith.constant 0 : index
    %11 = vector.load %arg5[%c0_8, %c0_9] : memref<1x128xf32, #tpu.memory_space<vmem>>, vector<1x128xf32>
    %12 = vector.broadcast %11 : vector<1x128xf32> to vector<16x128xf32>
    %13 = arith.addf %10, %12 : vector<16x128xf32>
    %14 = arith.truncf %13 : vector<16x128xf32> to vector<16x128xbf16>
    %15 = math.tanh %14 : vector<16x128xbf16>
    %c0_10 = arith.constant 0 : index
    %c0_11 = arith.constant 0 : index
    %16 = vector.load %arg6[%c0_10, %c0_11] : memref<128x128xbf16, #tpu.memory_space<vmem>>, vector<128x128xbf16>
    %cst_12 = arith.constant dense<0.000000e+00> : vector<16x128xf32>
    %17 = tpu.matmul %15, %16, %cst_12 {dimension_numbers = #tpu.dot_dimension_numbers<[1], [0], [0], [1], [0, 0, 1, 1], [], []>} : vector<16x128xbf16>, vector<128x128xbf16>, vector<16x128xf32> -> vector<16x128xf32>
    %c0_13 = arith.constant 0 : index
    %c0_14 = arith.constant 0 : index
    %18 = vector.load %arg7[%c0_13, %c0_14] : memref<1x128xf32, #tpu.memory_space<vmem>>, vector<1x128xf32>
    %19 = vector.broadcast %18 : vector<1x128xf32> to vector<16x128xf32>
    %20 = arith.addf %17, %19 : vector<16x128xf32>
    %21 = arith.truncf %20 : vector<16x128xf32> to vector<16x128xbf16>
    %22 = math.tanh %21 : vector<16x128xbf16>
    %c0_15 = arith.constant 0 : index
    %c0_16 = arith.constant 0 : index
    %23 = vector.load %arg8[%c0_15, %c0_16] : memref<128x128xbf16, #tpu.memory_space<vmem>>, vector<128x128xbf16>
    %cst_17 = arith.constant dense<0.000000e+00> : vector<16x128xf32>
    %24 = tpu.matmul %22, %23, %cst_17 {dimension_numbers = #tpu.dot_dimension_numbers<[1], [0], [0], [1], [0, 0, 1, 1], [], []>} : vector<16x128xbf16>, vector<128x128xbf16>, vector<16x128xf32> -> vector<16x128xf32>
    %c0_18 = arith.constant 0 : index
    %c0_19 = arith.constant 0 : index
    %25 = vector.load %arg9[%c0_18, %c0_19] : memref<1x128xf32, #tpu.memory_space<vmem>>, vector<1x128xf32>
    %26 = vector.broadcast %25 : vector<1x128xf32> to vector<16x128xf32>
    %27 = arith.addf %24, %26 : vector<16x128xf32>
    %28 = vector.extract_strided_slice %27 {offsets = [0, 0], sizes = [16, 2], strides = [1, 1]} : vector<16x128xf32> to vector<16x2xf32>
    %c0_20 = arith.constant 0 : index
    %c0_21 = arith.constant 0 : index
    %29 = vector.load %arg10[%c0_20, %c0_21] : memref<16x2xf32, #tpu.memory_space<vmem>>, vector<16x2xf32>
    tpu.vector_store %arg10[%c0_20, %c0_21], %28 {strides = array<i32>} : memref<16x2xf32, #tpu.memory_space<vmem>>, vector<16x2xf32>,
    return
  }
  func.func @transform_0(%arg0: i32) -> (i32, i32) {
    %c0_i32 = arith.constant 0 : i32
    %c0_i32_0 = arith.constant 0 : i32
    return %arg0, %c0_i32 : i32, i32
  }
  func.func @transform_1(%arg0: i32) -> (i32, i32) {
    %c0_i32 = arith.constant 0 : i32
    %c0_i32_0 = arith.constant 0 : i32
    %c0_i32_1 = arith.constant 0 : i32
    return %c0_i32, %c0_i32_0 : i32, i32
  }
  func.func @transform_2(%arg0: i32) -> (i32, i32) {
    %c0_i32 = arith.constant 0 : i32
    %c0_i32_0 = arith.constant 0 : i32
    %c0_i32_1 = arith.constant 0 : i32
    return %c0_i32, %c0_i32_0 : i32, i32
  }
  func.func @transform_3(%arg0: i32) -> (i32, i32) {
    %c0_i32 = arith.constant 0 : i32
    %c0_i32_0 = arith.constant 0 : i32
    %c0_i32_1 = arith.constant 0 : i32
    return %c0_i32, %c0_i32_0 : i32, i32
  }
  func.func @transform_4(%arg0: i32) -> (i32, i32) {
    %c0_i32 = arith.constant 0 : i32
    %c0_i32_0 = arith.constant 0 : i32
    %c0_i32_1 = arith.constant 0 : i32
    return %c0_i32, %c0_i32_0 : i32, i32
  }
  func.func @transform_5(%arg0: i32) -> (i32, i32) {
    %c0_i32 = arith.constant 0 : i32
    %c0_i32_0 = arith.constant 0 : i32
    %c0_i32_1 = arith.constant 0 : i32
    return %c0_i32, %c0_i32_0 : i32, i32
  }
  func.func @transform_6(%arg0: i32) -> (i32, i32) {
    %c0_i32 = arith.constant 0 : i32
    %c0_i32_0 = arith.constant 0 : i32
    %c0_i32_1 = arith.constant 0 : i32
    return %c0_i32, %c0_i32_0 : i32, i32
  }
  func.func @transform_7(%arg0: i32) -> (i32, i32) {
    %c0_i32 = arith.constant 0 : i32
    %c0_i32_0 = arith.constant 0 : i32
    %c0_i32_1 = arith.constant 0 : i32
    return %c0_i32, %c0_i32_0 : i32, i32
  }
  func.func @transform_8(%arg0: i32) -> (i32, i32) {
    %c0_i32 = arith.constant 0 : i32
    %c0_i32_0 = arith.constant 0 : i32
    %c0_i32_1 = arith.constant 0 : i32
    return %c0_i32, %c0_i32_0 : i32, i32
  }
  func.func @transform_9(%arg0: i32) -> (i32, i32) {
    %c0_i32 = arith.constant 0 : i32
    %c0_i32_0 = arith.constant 0 : i32
    return %arg0, %c0_i32 : i32, i32
  }
}

module attributes {stable_mosaic.version = 11 : i64} {
  func.func @_mlp_kernel(%arg0: i32, %arg1: memref<16x32xf32, #tpu.memory_space<vmem>>, %arg2: memref<32x256xbf16, #tpu.memory_space<vmem>>, %arg3: memref<1x256xf32, #tpu.memory_space<vmem>>, %arg4: memref<256x128xbf16, #tpu.memory_space<vmem>>, %arg5: memref<1x128xf32, #tpu.memory_space<vmem>>, %arg6: memref<128x128xbf16, #tpu.memory_space<vmem>>, %arg7: memref<1x128xf32, #tpu.memory_space<vmem>>, %arg8: memref<128x128xbf16, #tpu.memory_space<vmem>>, %arg9: memref<1x128xf32, #tpu.memory_space<vmem>>, %arg10: memref<16x2xf32, #tpu.memory_space<vmem>>) attributes {dimension_semantics = [#tpu.dimension_semantics<parallel>], iteration_bounds = array<i64: 1>, scalar_prefetch = 0 : i64, scratch_operands = 0 : i64, tpu.core_type = #tpu.core_type<tc>, window_params = [{transform_indices = @transform_0, window_bounds = array<i64: 16, 32>}, {pipeline_mode = #tpu.pipeline_mode<synchronous>, transform_indices = @transform_1, window_bounds = array<i64: 32, 256>}, {pipeline_mode = #tpu.pipeline_mode<synchronous>, transform_indices = @transform_2, window_bounds = array<i64: 1, 256>}, {pipeline_mode = #tpu.pipeline_mode<synchronous>, transform_indices = @transform_3, window_bounds = array<i64: 256, 128>}, {pipeline_mode = #tpu.pipeline_mode<synchronous>, transform_indices = @transform_4, window_bounds = array<i64: 1, 128>}, {pipeline_mode = #tpu.pipeline_mode<synchronous>, transform_indices = @transform_5, window_bounds = array<i64: 128, 128>}, {pipeline_mode = #tpu.pipeline_mode<synchronous>, transform_indices = @transform_6, window_bounds = array<i64: 1, 128>}, {pipeline_mode = #tpu.pipeline_mode<synchronous>, transform_indices = @transform_7, window_bounds = array<i64: 128, 128>}, {pipeline_mode = #tpu.pipeline_mode<synchronous>, transform_indices = @transform_8, window_bounds = array<i64: 1, 128>}, {transform_indices = @transform_9, window_bounds = array<i64: 16, 2>}]} {
    %c0 = arith.constant 0 : index
    %c0_0 = arith.constant 0 : index
    %0 = vector.load %arg1[%c0, %c0_0] : memref<16x32xf32, #tpu.memory_space<vmem>>, vector<16x32xf32>
    %1 = arith.truncf %0 : vector<16x32xf32> to vector<16x32xbf16>
    %c0_1 = arith.constant 0 : index
    %c0_2 = arith.constant 0 : index
    %2 = vector.load %arg2[%c0_1, %c0_2] : memref<32x256xbf16, #tpu.memory_space<vmem>>, vector<32x256xbf16>
    %cst = arith.constant dense<0.000000e+00> : vector<16x256xf32>
    %3 = tpu.matmul %1, %2, %cst {dimension_numbers = #tpu.dot_dimension_numbers<[1], [0], [0], [1], [0, 0, 1, 1], [], []>} : vector<16x32xbf16>, vector<32x256xbf16>, vector<16x256xf32> -> vector<16x256xf32>
    %c0_3 = arith.constant 0 : index
    %c0_4 = arith.constant 0 : index
    %4 = vector.load %arg3[%c0_3, %c0_4] : memref<1x256xf32, #tpu.memory_space<vmem>>, vector<1x256xf32>
    %5 = vector.broadcast %4 : vector<1x256xf32> to vector<16x256xf32>
    %6 = arith.addf %3, %5 : vector<16x256xf32>
    %7 = arith.truncf %6 : vector<16x256xf32> to vector<16x256xbf16>
    %8 = math.tanh %7 : vector<16x256xbf16>
    %c0_5 = arith.constant 0 : index
    %c0_6 = arith.constant 0 : index
    %9 = vector.load %arg4[%c0_5, %c0_6] : memref<256x128xbf16, #tpu.memory_space<vmem>>, vector<256x128xbf16>
    %cst_7 = arith.constant dense<0.000000e+00> : vector<16x128xf32>
    %10 = tpu.matmul %8, %9, %cst_7 {dimension_numbers = #tpu.dot_dimension_numbers<[1], [0], [0], [1], [0, 0, 1, 1], [], []>} : vector<16x256xbf16>, vector<256x128xbf16>, vector<16x128xf32> -> vector<16x128xf32>
    %c0_8 = arith.constant 0 : index
    %c0_9 = arith.constant 0 : index
    %11 = vector.load %arg5[%c0_8, %c0_9] : memref<1x128xf32, #tpu.memory_space<vmem>>, vector<1x128xf32>
    %12 = vector.broadcast %11 : vector<1x128xf32> to vector<16x128xf32>
    %13 = arith.addf %10, %12 : vector<16x128xf32>
    %14 = arith.truncf %13 : vector<16x128xf32> to vector<16x128xbf16>
    %15 = math.tanh %14 : vector<16x128xbf16>
    %c0_10 = arith.constant 0 : index
    %c0_11 = arith.constant 0 : index
    %16 = vector.load %arg6[%c0_10, %c0_11] : memref<128x128xbf16, #tpu.memory_space<vmem>>, vector<128x128xbf16>
    %cst_12 = arith.constant dense<0.000000e+00> : vector<16x128xf32>
    %17 = tpu.matmul %15, %16, %cst_12 {dimension_numbers = #tpu.dot_dimension_numbers<[1], [0], [0], [1], [0, 0, 1, 1], [], []>} : vector<16x128xbf16>, vector<128x128xbf16>, vector<16x128xf32> -> vector<16x128xf32>
    %c0_13 = arith.constant 0 : index
    %c0_14 = arith.constant 0 : index
    %18 = vector.load %arg7[%c0_13, %c0_14] : memref<1x128xf32, #tpu.memory_space<vmem>>, vector<1x128xf32>
    %19 = vector.broadcast %18 : vector<1x128xf32> to vector<16x128xf32>
    %20 = arith.addf %17, %19 : vector<16x128xf32>
    %21 = arith.truncf %20 : vector<16x128xf32> to vector<16x128xbf16>
    %22 = math.tanh %21 : vector<16x128xbf16>
    %c0_15 = arith.constant 0 : index
    %c0_16 = arith.constant 0 : index
    %23 = vector.load %arg8[%c0_15, %c0_16] : memref<128x128xbf16, #tpu.memory_space<vmem>>, vector<128x128xbf16>
    %cst_17 = arith.constant dense<0.000000e+00> : vector<16x128xf32>
    %24 = tpu.matmul %22, %23, %cst_17 {dimension_numbers = #tpu.dot_dimension_numbers<[1], [0], [0], [1], [0, 0, 1, 1], [], []>} : vector<16x128xbf16>, vector<128x128xbf16>, vector<16x128xf32> -> vector<16x128xf32>
    %c0_18 = arith.constant 0 : index
    %c0_19 = arith.constant 0 : index
    %25 = vector.load %arg9[%c0_18, %c0_19] : memref<1x128xf32, #tpu.memory_space<vmem>>, vector<1x128xf32>
    %26 = vector.broadcast %25 : vector<1x128xf32> to vector<16x128xf32>
    %27 = arith.addf %24, %26 : vector<16x128xf32>
    %28 = vector.extract_strided_slice %27 {offsets = [0, 0], sizes = [16, 2], strides = [1, 1]} : vector<16x128xf32> to vector<16x2xf32>
    %c0_20 = arith.constant 0 : index
    %c0_21 = arith.constant 0 : index
    %29 = vector.load %arg10[%c0_20, %c0_21] : memref<16x2xf32, #tpu.memory_space<vmem>>, vector<16x2xf32>
    tpu.vector_store %arg10[%c0_20, %c0_21], %28 {strides = array<i32>} : memref<16x2xf32, #tpu.memory_space<vmem>>, vector<16x2xf32>,
    return
  }
  func.func @transform_0(%arg0: i32) -> (i32, i32) {
    %c0_i32 = arith.constant 0 : i32
    %c0_i32_0 = arith.constant 0 : i32
    return %arg0, %c0_i32 : i32, i32
  }
  func.func @transform_1(%arg0: i32) -> (i32, i32) {
    %c0_i32 = arith.constant 0 : i32
    %c0_i32_0 = arith.constant 0 : i32
    %c0_i32_1 = arith.constant 0 : i32
    return %c0_i32, %c0_i32_0 : i32, i32
  }
  func.func @transform_2(%arg0: i32) -> (i32, i32) {
    %c0_i32 = arith.constant 0 : i32
    %c0_i32_0 = arith.constant 0 : i32
    %c0_i32_1 = arith.constant 0 : i32
    return %c0_i32, %c0_i32_0 : i32, i32
  }
  func.func @transform_3(%arg0: i32) -> (i32, i32) {
    %c0_i32 = arith.constant 0 : i32
    %c0_i32_0 = arith.constant 0 : i32
    %c0_i32_1 = arith.constant 0 : i32
    return %c0_i32, %c0_i32_0 : i32, i32
  }
  func.func @transform_4(%arg0: i32) -> (i32, i32) {
    %c0_i32 = arith.constant 0 : i32
    %c0_i32_0 = arith.constant 0 : i32
    %c0_i32_1 = arith.constant 0 : i32
    return %c0_i32, %c0_i32_0 : i32, i32
  }
  func.func @transform_5(%arg0: i32) -> (i32, i32) {
    %c0_i32 = arith.constant 0 : i32
    %c0_i32_0 = arith.constant 0 : i32
    %c0_i32_1 = arith.constant 0 : i32
    return %c0_i32, %c0_i32_0 : i32, i32
  }
  func.func @transform_6(%arg0: i32) -> (i32, i32) {
    %c0_i32 = arith.constant 0 : i32
    %c0_i32_0 = arith.constant 0 : i32
    %c0_i32_1 = arith.constant 0 : i32
    return %c0_i32, %c0_i32_0 : i32, i32
  }
  func.func @transform_7(%arg0: i32) -> (i32, i32) {
    %c0_i32 = arith.constant 0 : i32
    %c0_i32_0 = arith.constant 0 : i32
    %c0_i32_1 = arith.constant 0 : i32
    return %c0_i32, %c0_i32_0 : i32, i32
  }
  func.func @transform_8(%arg0: i32) -> (i32, i32) {
    %c0_i32 = arith.constant 0 : i32
    %c0_i32_0 = arith.constant 0 : i32
    %c0_i32_1 = arith.constant 0 : i32
    return %c0_i32, %c0_i32_0 : i32, i32
  }
  func.func @transform_9(%arg0: i32) -> (i32, i32) {
    %c0_i32 = arith.constant 0 : i32
    %c0_i32_0 = arith.constant 0 : i32
    return %arg0, %c0_i32 : i32, i32
  }
}

</mosaic_0001>

<llo_original>
// kernel: tpu_custom_call.1
$region0: #{tpu_custom_call.1}
  #allocation0 [shape = 'u32[]', space=smem, size = 0x4, offset = 0x4, fixed_abs, tag = 'smem constant byte address 0x4 - core index']
  #allocation1 [shape = 'u32[72,128]{1,0:T(1,128)}', space=vmem, size = 0x9000, scoped, tag = 'internal scratch']
  %s0 = inlined_call_operand.hbm [shape: f32[16,32], index: 0, kind: input, shape index: {}]
  %s1 = inlined_call_operand.hbm [shape: bf16[32,256], index: 1, kind: input, shape index: {}]
  %s2 = inlined_call_operand.hbm [shape: f32[1,256], index: 2, kind: input, shape index: {}]
  %s3 = inlined_call_operand.hbm [shape: bf16[256,128], index: 3, kind: input, shape index: {}]
  %s4 = inlined_call_operand.vmem [shape: f32[1,128], index: 4, kind: input, shape index: {}]
  %s5 = inlined_call_operand.hbm [shape: bf16[128,128], index: 5, kind: input, shape index: {}]
  %s6 = inlined_call_operand.vmem [shape: f32[1,128], index: 6, kind: input, shape index: {}]
  %s7 = inlined_call_operand.hbm [shape: bf16[128,128], index: 7, kind: input, shape index: {}]
  %s8 = inlined_call_operand.vmem [shape: f32[1,128], index: 8, kind: input, shape index: {}]
  %s9 = inlined_call_operand.vmem [shape: f32[16,2], index: 9, kind: output, shape index: {}]
  %s10 = sld [smem:[#allocation0]]
  $region70: #{tpu_custom_call.1} parent=0
    _
  %s12 = ssub.s32 1, %s10
  %s13 = scalar_select 0, %s12, %s10
  $region1: #{tpu_custom_call.1} parent=0
    #allocation2 [shape = 'u8[8192]{0}', space=vmem, size = 0x2000, scoped, tag = 'input window, operand 0, single buffered']
    #allocation3 [shape = 's32[1]{0}', space=sflag, size = 0x4, scoped, tag = 'scoped memory for tpu_custom_call.1']
    #allocation4 [shape = 'u8[16384]{0}', space=vmem, size = 0x4000, scoped, tag = 'input window, operand 1, single buffered']
    #allocation5 [shape = 's32[1]{0}', space=sflag, size = 0x4, scoped, tag = 'scoped memory for tpu_custom_call.1']
    #allocation6 [shape = 'u8[1024]{0}', space=vmem, size = 0x400, scoped, tag = 'input window, operand 2, single buffered']
    #allocation7 [shape = 'u8[65536]{0}', space=vmem, size = 0x10000, scoped, tag = 'input window, operand 3, single buffered']
    #allocation8 [shape = 's32[1]{0}', space=sflag, size = 0x4, scoped, tag = 'scoped memory for tpu_custom_call.1']
    #allocation9 [shape = 'u8[32768]{0}', space=vmem, size = 0x8000, scoped, tag = 'input window, operand 5, single buffered']
    #allocation10 [shape = 'u8[32768]{0}', space=vmem, size = 0x8000, scoped, tag = 'input window, operand 7, single buffered']
    #allocation11 [shape = 's32[1]{0}', space=sflag, size = 0x4, scoped, tag = 'scoped memory for tpu_custom_call.1']
    %14 = vsyncpa [#allocation3], 0
    %15 = vsyncpa [#allocation5], 0
    %16 = vsyncpa [#allocation8], 0
    %17 = vsyncpa [#allocation11], 0
    // Predicated region
    $region2: #{tpu_custom_call.1} parent=1 // pred_check
      _
    $region3: #{tpu_custom_call.1} parent=1 // pred_check_branch
      %19 = sbr.rel (0) target = $region5
    $region4: #{tpu_custom_call.1} parent=1 // pred_region
      %21 = vsyncadd [#allocation3], 0
      %s22 = sshll.u32 %s0, 4
      %s23 = int_to_ptr.hbm [resolvable:$true] %s22
      %s24 = sshll.u32 [#allocation2], 4
      %s25 = int_to_ptr.vmem [resolvable:$true] %s24
      %30 = dma.hbm_to_vmem [thread:$0]  %s23, 256, %s25, [#allocation3], 128, 128, 8
    $region5: #{tpu_custom_call.1} parent=1 // pred_fallthru
      _
    // Predicated region
    $region6: #{tpu_custom_call.1} parent=1 // pred_check
      _
    $region7: #{tpu_custom_call.1} parent=1 // pred_check_branch
      %32 = sbr.rel (0) target = $region9
    $region8: #{tpu_custom_call.1} parent=1 // pred_region
      %34 = vsyncadd [#allocation5], 0
      %s35 = sshll.u32 %s1, 4
      %s36 = int_to_ptr.hbm [resolvable:$true] %s35
      %s37 = sshll.u32 [#allocation4], 4
      %s38 = int_to_ptr.vmem [resolvable:$true] %s37
      %43 = dma.hbm_to_vmem [thread:$0]  %s36, 512, %s38, [#allocation5], 128, 128, 8
    $region9: #{tpu_custom_call.1} parent=1 // pred_fallthru
      _
    // Predicated region
    $region10: #{tpu_custom_call.1} parent=1 // pred_check
      _
    $region11: #{tpu_custom_call.1} parent=1 // pred_check_branch
      %45 = sbr.rel (0) target = $region13
    $region12: #{tpu_custom_call.1} parent=1 // pred_region
      %47 = vsyncadd [#allocation5], 0
      %s49 = sshll.u32 %s2, 4
      %s50 = int_to_ptr.hbm [resolvable:$true] %s49
      %s51 = sshll.u32 [#allocation6], 4
      %s52 = int_to_ptr.vmem [resolvable:$true] %s51
      %54 = dma.hbm_to_vmem [thread:$0]  %s50, 32, %s52, [#allocation5]
    $region13: #{tpu_custom_call.1} parent=1 // pred_fallthru
      _
    // Predicated region
    $region14: #{tpu_custom_call.1} parent=1 // pred_check
      _
    $region15: #{tpu_custom_call.1} parent=1 // pred_check_branch
      %56 = sbr.rel (0) target = $region17
    $region16: #{tpu_custom_call.1} parent=1 // pred_region
      %58 = vsyncadd [#allocation8], 0
      %s59 = sshll.u32 %s3, 4
      %s60 = int_to_ptr.hbm [resolvable:$true] %s59
      %s61 = sshll.u32 [#allocation7], 4
      %s62 = int_to_ptr.vmem [resolvable:$true] %s61
      %67 = dma.hbm_to_vmem [thread:$0]  %s60, 2048, %s62, [#allocation8], 64, 64, 4
    $region17: #{tpu_custom_call.1} parent=1 // pred_fallthru
      _
    // Predicated region
    $region18: #{tpu_custom_call.1} parent=1 // pred_check
      _
    $region19: #{tpu_custom_call.1} parent=1 // pred_check_branch
      %69 = sbr.rel (0) target = $region21
    $region20: #{tpu_custom_call.1} parent=1 // pred_region
      _
    $region21: #{tpu_custom_call.1} parent=1 // pred_fallthru
      _
    // Predicated region
    $region22: #{tpu_custom_call.1} parent=1 // pred_check
      _
    $region23: #{tpu_custom_call.1} parent=1 // pred_check_branch
      %71 = sbr.rel (0) target = $region25
    $region24: #{tpu_custom_call.1} parent=1 // pred_region
      %73 = vsyncadd [#allocation8], 0
      %s74 = sshll.u32 %s5, 4
      %s75 = int_to_ptr.hbm [resolvable:$true] %s74
      %s76 = sshll.u32 [#allocation9], 4
      %s77 = int_to_ptr.vmem [resolvable:$true] %s76
      %82 = dma.hbm_to_vmem [thread:$0]  %s75, 1024, %s77, [#allocation8], 64, 64, 4
    $region25: #{tpu_custom_call.1} parent=1 // pred_fallthru
      _
    // Predicated region
    $region26: #{tpu_custom_call.1} parent=1 // pred_check
      _
    $region27: #{tpu_custom_call.1} parent=1 // pred_check_branch
      %84 = sbr.rel (0) target = $region29
    $region28: #{tpu_custom_call.1} parent=1 // pred_region
      _
    $region29: #{tpu_custom_call.1} parent=1 // pred_fallthru
      _
    // Predicated region
    $region30: #{tpu_custom_call.1} parent=1 // pred_check
      _
    $region31: #{tpu_custom_call.1} parent=1 // pred_check_branch
      %86 = sbr.rel (0) target = $region33
    $region32: #{tpu_custom_call.1} parent=1 // pred_region
      %88 = vsyncadd [#allocation11], 0
      %s89 = sshll.u32 %s7, 4
      %s90 = int_to_ptr.hbm [resolvable:$true] %s89
      %s91 = sshll.u32 [#allocation10], 4
      %s92 = int_to_ptr.vmem [resolvable:$true] %s91
      %97 = dma.hbm_to_vmem [thread:$0]  %s90, 1024, %s92, [#allocation11], 64, 64, 4
    $region33: #{tpu_custom_call.1} parent=1 // pred_fallthru
      _
    // Predicated region
    $region34: #{tpu_custom_call.1} parent=1 // pred_check
      _
    $region35: #{tpu_custom_call.1} parent=1 // pred_check_branch
      %99 = sbr.rel (0) target = $region37
    $region36: #{tpu_custom_call.1} parent=1 // pred_region
      _
    $region37: #{tpu_custom_call.1} parent=1 // pred_fallthru
      _
    // Predicated region
    $region38: #{tpu_custom_call.1} parent=1 // pred_check
      _
    $region39: #{tpu_custom_call.1} parent=1 // pred_check_branch
      %101 = sbr.rel (0) target = $region41
    $region40: #{tpu_custom_call.1} parent=1 // pred_region
      %103 = dma.done [#allocation3], 256
    $region41: #{tpu_custom_call.1} parent=1 // pred_fallthru
      _
    // Predicated region
    $region42: #{tpu_custom_call.1} parent=1 // pred_check
      _
    $region43: #{tpu_custom_call.1} parent=1 // pred_check_branch
      %105 = sbr.rel (0) target = $region45
    $region44: #{tpu_custom_call.1} parent=1 // pred_region
      %107 = dma.done [#allocation5], 512
    $region45: #{tpu_custom_call.1} parent=1 // pred_fallthru
      _
    // Predicated region
    $region46: #{tpu_custom_call.1} parent=1 // pred_check
      _
    $region47: #{tpu_custom_call.1} parent=1 // pred_check_branch
      %109 = sbr.rel (0) target = $region49
    $region48: #{tpu_custom_call.1} parent=1 // pred_region
      %111 = dma.done [#allocation5], 32
    $region49: #{tpu_custom_call.1} parent=1 // pred_fallthru
      _
    // Predicated region
    $region50: #{tpu_custom_call.1} parent=1 // pred_check
      _
    $region51: #{tpu_custom_call.1} parent=1 // pred_check_branch
      %113 = sbr.rel (0) target = $region53
    $region52: #{tpu_custom_call.1} parent=1 // pred_region
      %115 = dma.done [#allocation8], 2048
    $region53: #{tpu_custom_call.1} parent=1 // pred_fallthru
      _
    // Predicated region
    $region54: #{tpu_custom_call.1} parent=1 // pred_check
      _
    $region55: #{tpu_custom_call.1} parent=1 // pred_check_branch
      %117 = sbr.rel (0) target = $region57
    $region56: #{tpu_custom_call.1} parent=1 // pred_region
      %119 = dma.done [#allocation8], 1024
    $region57: #{tpu_custom_call.1} parent=1 // pred_fallthru
      _
    // Predicated region
    $region58: #{tpu_custom_call.1} parent=1 // pred_check
      _
    $region59: #{tpu_custom_call.1} parent=1 // pred_check_branch
      %121 = sbr.rel (0) target = $region61
    $region60: #{tpu_custom_call.1} parent=1 // pred_region
      %123 = dma.done [#allocation11], 1024
    $region61: #{tpu_custom_call.1} parent=1 // pred_fallthru
      _
    %v125 = vld [vmem:[#allocation2] sm:$0xff]
    %v126 = vld [vmem:[#allocation2 + $0x8] sm:$0xff]
    %v127 = vpack.c.bf16 %v126, %v125
    %v128 = vld [vmem:[#allocation4] sm:$0xff]
    %v129 = vld [vmem:[#allocation4 + $0x8] sm:$0xff]
    %v130 = vld [vmem:[#allocation4 + $0x10] sm:$0xff]
    %v131 = vld [vmem:[#allocation4 + $0x18] sm:$0xff]
    %v132 = vld [vmem:[#allocation6] sm:$0x3]
    %v134 = vperm.slane %v132, 0
    %v135 = vperm.slane %v132, 1
    %v142 = vunpack.c.l.b16 %v128
    %v143 = vunpack.c.h.b16 %v128
    %v144 = vunpack.c.l.b16 %v129
    %v145 = vunpack.c.h.b16 %v129
    %v146 = vunpack.c.l.b16 %v130
    %v147 = vunpack.c.h.b16 %v130
    %v148 = vunpack.c.l.b16 %v131
    %v149 = vunpack.c.h.b16 %v131
    %v150 = vpack.c.b16 %v144, %v142
    %v151 = vpack.c.b16 %v145, %v143
    %v152 = vpack.c.b16 %v148, %v146
    %v153 = vpack.c.b16 %v149, %v147
    %vm158 = vcmask 261120
    %v160 = vsel %vm158, %v127, 0
    %162 = vmatpush.bf16.msra.mxu0 0
    %163 = vmatpush.bf16.msra.mxu0 0
    %164 = vmatpush.bf16.msra.mxu0 0
    %165 = vmatpush.bf16.msra.mxu0 0
    %166 = vmatpush.bf16.msra.mxu0 0
    %167 = vmatpush.bf16.msra.mxu0 0
    %168 = vmatpush.bf16.msra.mxu0 %v152
    %169 = vmatpush.bf16.msra.mxu0 %v150
    %170 = vmatmul.bf16.gmra.mxu0 %v160
    %v171 = vpop.f32.mrf.mxu0
    %v172 = vadd.f32 %v134, %v171
    %v173 = vpop.f32.mrf.mxu0
    %v174 = vadd.f32 %v134, %v173
    %175 = vdwg.mxu0
    %176 = vmatpush.bf16.msra.mxu0 0
    %177 = vmatpush.bf16.msra.mxu0 0
    %178 = vmatpush.bf16.msra.mxu0 0
    %179 = vmatpush.bf16.msra.mxu0 0
    %180 = vmatpush.bf16.msra.mxu0 0
    %181 = vmatpush.bf16.msra.mxu0 0
    %182 = vmatpush.bf16.msra.mxu0 %v153
    %183 = vmatpush.bf16.msra.mxu0 %v151
    %184 = vmatmul.bf16.gmra.mxu0 %v160
    %v185 = vpop.f32.mrf.mxu0
    %v186 = vadd.f32 %v135, %v185
    %v187 = vpop.f32.mrf.mxu0
    %v188 = vadd.f32 %v135, %v187
    %189 = vdwg.mxu0
    %v190 = vpack.c.bf16 %v174, %v172
    %v191 = vpack.c.bf16 %v188, %v186
    %v192 = vunpack.c.l.bf16 %v190
    %v193 = vunpack.c.l.bf16 %v191
    %v194 = vunpack.c.h.bf16 %v190
    %v195 = vunpack.c.h.bf16 %v191
    %v196 = vtanh.pop %v192
    %v197 = vtanh.pop %v193
    %v198 = vtanh.pop %v194
    %v199 = vtanh.pop %v195
    %v200 = vpack.c.bf16 %v198, %v196
    %v201 = vpack.c.bf16 %v199, %v197
    %v202 = vld [vmem:[#allocation7] sm:$0xf]
    %v203 = vld [vmem:[#allocation7 + $0x4] sm:$0xf]
    %v204 = vld [vmem:[#allocation7 + $0x8] sm:$0xf]
    %v205 = vld [vmem:[#allocation7 + $0xc] sm:$0xf]
    %v206 = vld [vmem:[#allocation7 + $0x10] sm:$0xf]
    %v207 = vld [vmem:[#allocation7 + $0x14] sm:$0xf]
    %v208 = vld [vmem:[#allocation7 + $0x18] sm:$0xf]
    %v209 = vld [vmem:[#allocation7 + $0x1c] sm:$0xf]
    %v210 = vld [vmem:[#allocation7 + $0x20] sm:$0xf]
    %v211 = vld [vmem:[#allocation7 + $0x24] sm:$0xf]
    %v212 = vld [vmem:[#allocation7 + $0x28] sm:$0xf]
    %v213 = vld [vmem:[#allocation7 + $0x2c] sm:$0xf]
    %v214 = vld [vmem:[#allocation7 + $0x30] sm:$0xf]
    %v215 = vld [vmem:[#allocation7 + $0x34] sm:$0xf]
    %v216 = vld [vmem:[#allocation7 + $0x38] sm:$0xf]
    %v217 = vld [vmem:[#allocation7 + $0x3c] sm:$0xf]
    %v218 = vld [vmem:[#allocation7 + $0x40] sm:$0xf]
    %v219 = vld [vmem:[#allocation7 + $0x44] sm:$0xf]
    %v220 = vld [vmem:[#allocation7 + $0x48] sm:$0xf]
    %v221 = vld [vmem:[#allocation7 + $0x4c] sm:$0xf]
    %v222 = vld [vmem:[#allocation7 + $0x50] sm:$0xf]
    %v223 = vld [vmem:[#allocation7 + $0x54] sm:$0xf]
    %v224 = vld [vmem:[#allocation7 + $0x58] sm:$0xf]
    %v225 = vld [vmem:[#allocation7 + $0x5c] sm:$0xf]
    %v226 = vld [vmem:[#allocation7 + $0x60] sm:$0xf]
    %v227 = vld [vmem:[#allocation7 + $0x64] sm:$0xf]
    %v228 = vld [vmem:[#allocation7 + $0x68] sm:$0xf]
    %v229 = vld [vmem:[#allocation7 + $0x6c] sm:$0xf]
    %v230 = vld [vmem:[#allocation7 + $0x70] sm:$0xf]
    %v231 = vld [vmem:[#allocation7 + $0x74] sm:$0xf]
    %v232 = vld [vmem:[#allocation7 + $0x78] sm:$0xf]
    %v233 = vld [vmem:[#allocation7 + $0x7c] sm:$0xf]
    %v234 = vld [vmem:[%s4] sm:$0x1]
    %v236 = vperm.slane %v234, 0
    %v270 = vunpack.c.l.b16 %v202
    %v271 = vunpack.c.l.b16 %v203
    %v272 = vunpack.c.l.b16 %v204
    %v273 = vunpack.c.l.b16 %v205
    %v274 = vunpack.c.l.b16 %v206
    %v275 = vunpack.c.l.b16 %v207
    %v276 = vunpack.c.l.b16 %v208
    %v277 = vunpack.c.l.b16 %v209
    %v278 = vunpack.c.l.b16 %v210
    %v279 = vunpack.c.l.b16 %v211
    %v280 = vunpack.c.l.b16 %v212
    %v281 = vunpack.c.l.b16 %v213
    %v282 = vunpack.c.l.b16 %v214
    %v283 = vunpack.c.l.b16 %v215
    %v284 = vunpack.c.l.b16 %v216
    %v285 = vunpack.c.l.b16 %v217
    %v286 = vunpack.c.l.b16 %v218
    %v287 = vunpack.c.l.b16 %v219
    %v288 = vunpack.c.l.b16 %v220
    %v289 = vunpack.c.l.b16 %v221
    %v290 = vunpack.c.l.b16 %v222
    %v291 = vunpack.c.l.b16 %v223
    %v292 = vunpack.c.l.b16 %v224
    %v293 = vunpack.c.l.b16 %v225
    %v294 = vunpack.c.l.b16 %v226
    %v295 = vunpack.c.l.b16 %v227
    %v296 = vunpack.c.l.b16 %v228
    %v297 = vunpack.c.l.b16 %v229
    %v298 = vunpack.c.l.b16 %v230
    %v299 = vunpack.c.l.b16 %v231
    %v300 = vunpack.c.l.b16 %v232
    %v301 = vunpack.c.l.b16 %v233
    %v302 = vpack.c.b16 %v271, %v270
    %v303 = vpack.c.b16 %v273, %v272
    %v304 = vpack.c.b16 %v275, %v274
    %v305 = vpack.c.b16 %v277, %v276
    %v306 = vpack.c.b16 %v279, %v278
    %v307 = vpack.c.b16 %v281, %v280
    %v308 = vpack.c.b16 %v283, %v282
    %v309 = vpack.c.b16 %v285, %v284
    %v310 = vpack.c.b16 %v287, %v286
    %v311 = vpack.c.b16 %v289, %v288
    %v312 = vpack.c.b16 %v291, %v290
    %v313 = vpack.c.b16 %v293, %v292
    %v314 = vpack.c.b16 %v295, %v294
    %v315 = vpack.c.b16 %v297, %v296
    %v316 = vpack.c.b16 %v299, %v298
    %v317 = vpack.c.b16 %v301, %v300
    %334 = vmatpush.bf16.msra.mxu0 %v309
    %335 = vmatpush.bf16.msra.mxu0 %v308
    %336 = vmatpush.bf16.msra.mxu0 %v307
    %337 = vmatpush.bf16.msra.mxu0 %v306
    %338 = vmatpush.bf16.msra.mxu0 %v305
    %339 = vmatpush.bf16.msra.mxu0 %v304
    %340 = vmatpush.bf16.msra.mxu0 %v303
    %341 = vmatpush.bf16.msra.mxu0 %v302
    %342 = vmatmul.bf16.gmra.mxu0 %v200
    %v343 = vpop.f32.mrf.mxu0
    %v344 = vadd.f32 %v236, %v343
    %v345 = vpop.f32.mrf.mxu0
    %v346 = vadd.f32 %v236, %v345
    %347 = vdwg.mxu0
    %348 = vmatpush.bf16.msra.mxu0 %v317
    %349 = vmatpush.bf16.msra.mxu0 %v316
    %350 = vmatpush.bf16.msra.mxu0 %v315
    %351 = vmatpush.bf16.msra.mxu0 %v314
    %352 = vmatpush.bf16.msra.mxu0 %v313
    %353 = vmatpush.bf16.msra.mxu0 %v312
    %354 = vmatpush.bf16.msra.mxu0 %v311
    %355 = vmatpush.bf16.msra.mxu0 %v310
    %356 = vmatmul.bf16.gmra.mxu0 %v201
    %v357 = vpop.f32.mrf.mxu0
    %v358 = vadd.f32 %v344, %v357
    %v359 = vpop.f32.mrf.mxu0
    %v360 = vadd.f32 %v346, %v359
    %361 = vdwg.mxu0
    %v362 = vpack.c.bf16 %v360, %v358
    %v363 = vunpack.c.l.bf16 %v362
    %v364 = vunpack.c.h.bf16 %v362
    %v365 = vtanh.pop %v363
    %v366 = vtanh.pop %v364
    %v367 = vpack.c.bf16 %v366, %v365
    %v368 = vld [vmem:[#allocation9] sm:$0xf]
    %v369 = vld [vmem:[#allocation9 + $0x4] sm:$0xf]
    %v370 = vld [vmem:[#allocation9 + $0x8] sm:$0xf]
    %v371 = vld [vmem:[#allocation9 + $0xc] sm:$0xf]
    %v372 = vld [vmem:[#allocation9 + $0x10] sm:$0xf]
    %v373 = vld [vmem:[#allocation9 + $0x14] sm:$0xf]
    %v374 = vld [vmem:[#allocation9 + $0x18] sm:$0xf]
    %v375 = vld [vmem:[#allocation9 + $0x1c] sm:$0xf]
    %v376 = vld [vmem:[#allocation9 + $0x20] sm:$0xf]
    %v377 = vld [vmem:[#allocation9 + $0x24] sm:$0xf]
    %v378 = vld [vmem:[#allocation9 + $0x28] sm:$0xf]
    %v379 = vld [vmem:[#allocation9 + $0x2c] sm:$0xf]
    %v380 = vld [vmem:[#allocation9 + $0x30] sm:$0xf]
    %v381 = vld [vmem:[#allocation9 + $0x34] sm:$0xf]
    %v382 = vld [vmem:[#allocation9 + $0x38] sm:$0xf]
    %v383 = vld [vmem:[#allocation9 + $0x3c] sm:$0xf]
    %v384 = vld [vmem:[%s6] sm:$0x1]
    %v386 = vperm.slane %v384, 0
    %v404 = vunpack.c.l.b16 %v368
    %v405 = vunpack.c.l.b16 %v369
    %v406 = vunpack.c.l.b16 %v370
    %v407 = vunpack.c.l.b16 %v371
    %v408 = vunpack.c.l.b16 %v372
    %v409 = vunpack.c.l.b16 %v373
    %v410 = vunpack.c.l.b16 %v374
    %v411 = vunpack.c.l.b16 %v375
    %v412 = vunpack.c.l.b16 %v376
    %v413 = vunpack.c.l.b16 %v377
    %v414 = vunpack.c.l.b16 %v378
    %v415 = vunpack.c.l.b16 %v379
    %v416 = vunpack.c.l.b16 %v380
    %v417 = vunpack.c.l.b16 %v381
    %v418 = vunpack.c.l.b16 %v382
    %v419 = vunpack.c.l.b16 %v383
    %v420 = vpack.c.b16 %v405, %v404
    %v421 = vpack.c.b16 %v407, %v406
    %v422 = vpack.c.b16 %v409, %v408
    %v423 = vpack.c.b16 %v411, %v410
    %v424 = vpack.c.b16 %v413, %v412
    %v425 = vpack.c.b16 %v415, %v414
    %v426 = vpack.c.b16 %v417, %v416
    %v427 = vpack.c.b16 %v419, %v418
    %436 = vmatpush.bf16.msra.mxu0 %v427
    %437 = vmatpush.bf16.msra.mxu0 %v426
    %438 = vmatpush.bf16.msra.mxu0 %v425
    %439 = vmatpush.bf16.msra.mxu0 %v424
    %440 = vmatpush.bf16.msra.mxu0 %v423
    %441 = vmatpush.bf16.msra.mxu0 %v422
    %442 = vmatpush.bf16.msra.mxu0 %v421
    %443 = vmatpush.bf16.msra.mxu0 %v420
    %444 = vmatmul.bf16.gmra.mxu0 %v367
    %v445 = vpop.f32.mrf.mxu0
    %v446 = vadd.f32 %v386, %v445
    %v447 = vpop.f32.mrf.mxu0
    %v448 = vadd.f32 %v386, %v447
    %449 = vdwg.mxu0
    %v450 = vpack.c.bf16 %v448, %v446
    %v451 = vunpack.c.l.bf16 %v450
    %v452 = vunpack.c.h.bf16 %v450
    %v453 = vtanh.pop %v451
    %v454 = vtanh.pop %v452
    %v455 = vpack.c.bf16 %v454, %v453
    %v456 = vld [vmem:[#allocation10] sm:$0xf]
    %v457 = vld [vmem:[#allocation10 + $0x4] sm:$0xf]
    %v458 = vld [vmem:[#allocation10 + $0x8] sm:$0xf]
    %v459 = vld [vmem:[#allocation10 + $0xc] sm:$0xf]
    %v460 = vld [vmem:[#allocation10 + $0x10] sm:$0xf]
    %v461 = vld [vmem:[#allocation10 + $0x14] sm:$0xf]
    %v462 = vld [vmem:[#allocation10 + $0x18] sm:$0xf]
    %v463 = vld [vmem:[#allocation10 + $0x1c] sm:$0xf]
    %v464 = vld [vmem:[#allocation10 + $0x20] sm:$0xf]
    %v465 = vld [vmem:[#allocation10 + $0x24] sm:$0xf]
    %v466 = vld [vmem:[#allocation10 + $0x28] sm:$0xf]
    %v467 = vld [vmem:[#allocation10 + $0x2c] sm:$0xf]
    %v468 = vld [vmem:[#allocation10 + $0x30] sm:$0xf]
    %v469 = vld [vmem:[#allocation10 + $0x34] sm:$0xf]
    %v470 = vld [vmem:[#allocation10 + $0x38] sm:$0xf]
    %v471 = vld [vmem:[#allocation10 + $0x3c] sm:$0xf]
    %v472 = vld [vmem:[%s8] sm:$0x1]
    %v474 = vperm.slane %v472, 0
    %v492 = vunpack.c.l.b16 %v456
    %v493 = vunpack.c.l.b16 %v457
    %v494 = vunpack.c.l.b16 %v458
    %v495 = vunpack.c.l.b16 %v459
    %v496 = vunpack.c.l.b16 %v460
    %v497 = vunpack.c.l.b16 %v461
    %v498 = vunpack.c.l.b16 %v462
    %v499 = vunpack.c.l.b16 %v463
    %v500 = vunpack.c.l.b16 %v464
    %v501 = vunpack.c.l.b16 %v465
    %v502 = vunpack.c.l.b16 %v466
    %v503 = vunpack.c.l.b16 %v467
    %v504 = vunpack.c.l.b16 %v468
    %v505 = vunpack.c.l.b16 %v469
    %v506 = vunpack.c.l.b16 %v470
    %v507 = vunpack.c.l.b16 %v471
    %v508 = vpack.c.b16 %v493, %v492
    %v509 = vpack.c.b16 %v495, %v494
    %v510 = vpack.c.b16 %v497, %v496
    %v511 = vpack.c.b16 %v499, %v498
    %v512 = vpack.c.b16 %v501, %v500
    %v513 = vpack.c.b16 %v503, %v502
    %v514 = vpack.c.b16 %v505, %v504
    %v515 = vpack.c.b16 %v507, %v506
    %524 = vmatpush.bf16.msra.mxu0 %v515
    %525 = vmatpush.bf16.msra.mxu0 %v514
    %526 = vmatpush.bf16.msra.mxu0 %v513
    %527 = vmatpush.bf16.msra.mxu0 %v512
    %528 = vmatpush.bf16.msra.mxu0 %v511
    %529 = vmatpush.bf16.msra.mxu0 %v510
    %530 = vmatpush.bf16.msra.mxu0 %v509
    %531 = vmatpush.bf16.msra.mxu0 %v508
    %532 = vmatmul.bf16.gmra.mxu0 %v455
    %v533 = vpop.f32.mrf.mxu0
    %v534 = vadd.f32 %v474, %v533
    %v535 = vpop.f32.mrf.mxu0
    %v536 = vadd.f32 %v474, %v535
    %537 = vdwg.mxu0
    %vm538 = vcmask 15360
    %539 = vst.msk [vmem:[%s9] sm:$0xff] %vm538, %v534
    %540 = vst.msk [vmem:[%s9 + $0x8] sm:$0xff] %vm538, %v536
    // Predicated region
    $region62: #{tpu_custom_call.1} parent=1 // pred_check
      _
    $region63: #{tpu_custom_call.1} parent=1 // pred_check_branch
      %542 = sbr.rel (0) target = $region65
    $region64: #{tpu_custom_call.1} parent=1 // pred_region
      _
    $region65: #{tpu_custom_call.1} parent=1 // pred_fallthru
      _
    // Predicated region
    $region66: #{tpu_custom_call.1} parent=1 // pred_check
      _
    $region67: #{tpu_custom_call.1} parent=1 // pred_check_branch
      %544 = sbr.rel (0) target = $region69
    $region68: #{tpu_custom_call.1} parent=1 // pred_region
      _
    $region69: #{tpu_custom_call.1} parent=1 // pred_fallthru
      _
    %545 = vsyncpa [#allocation3], 1
    %546 = vsyncpa [#allocation5], 1
    %547 = vsyncpa [#allocation8], 1
    %548 = vsyncpa [#allocation11], 1

// kernel: tpu_custom_call.1
$region0: #{tpu_custom_call.1}
  #allocation0 [shape = 'u32[]', space=smem, size = 0x4, offset = 0x4, fixed_abs, tag = 'smem constant byte address 0x4 - core index']
  #allocation1 [shape = 'u32[72,128]{1,0:T(1,128)}', space=vmem, size = 0x9000, scoped, tag = 'internal scratch']
  %s0 = inlined_call_operand.hbm [shape: f32[16,32], index: 0, kind: input, shape index: {}]
  %s1 = inlined_call_operand.hbm [shape: bf16[32,256], index: 1, kind: input, shape index: {}]
  %s2 = inlined_call_operand.hbm [shape: f32[1,256], index: 2, kind: input, shape index: {}]
  %s3 = inlined_call_operand.hbm [shape: bf16[256,128], index: 3, kind: input, shape index: {}]
  %s4 = inlined_call_operand.vmem [shape: f32[1,128], index: 4, kind: input, shape index: {}]
  %s5 = inlined_call_operand.hbm [shape: bf16[128,128], index: 5, kind: input, shape index: {}]
  %s6 = inlined_call_operand.vmem [shape: f32[1,128], index: 6, kind: input, shape index: {}]
  %s7 = inlined_call_operand.hbm [shape: bf16[128,128], index: 7, kind: input, shape index: {}]
  %s8 = inlined_call_operand.vmem [shape: f32[1,128], index: 8, kind: input, shape index: {}]
  %s9 = inlined_call_operand.vmem [shape: f32[16,2], index: 9, kind: output, shape index: {}]
  %s10 = sld [smem:[#allocation0]]
  $region70: #{tpu_custom_call.1} parent=0
    _
  %s12 = ssub.s32 1, %s10
  %s13 = scalar_select 0, %s12, %s10
  $region1: #{tpu_custom_call.1} parent=0
    #allocation2 [shape = 'u8[8192]{0}', space=vmem, size = 0x2000, scoped, tag = 'input window, operand 0, single buffered']
    #allocation3 [shape = 's32[1]{0}', space=sflag, size = 0x4, scoped, tag = 'scoped memory for tpu_custom_call.1']
    #allocation4 [shape = 'u8[16384]{0}', space=vmem, size = 0x4000, scoped, tag = 'input window, operand 1, single buffered']
    #allocation5 [shape = 's32[1]{0}', space=sflag, size = 0x4, scoped, tag = 'scoped memory for tpu_custom_call.1']
    #allocation6 [shape = 'u8[1024]{0}', space=vmem, size = 0x400, scoped, tag = 'input window, operand 2, single buffered']
    #allocation7 [shape = 'u8[65536]{0}', space=vmem, size = 0x10000, scoped, tag = 'input window, operand 3, single buffered']
    #allocation8 [shape = 's32[1]{0}', space=sflag, size = 0x4, scoped, tag = 'scoped memory for tpu_custom_call.1']
    #allocation9 [shape = 'u8[32768]{0}', space=vmem, size = 0x8000, scoped, tag = 'input window, operand 5, single buffered']
    #allocation10 [shape = 'u8[32768]{0}', space=vmem, size = 0x8000, scoped, tag = 'input window, operand 7, single buffered']
    #allocation11 [shape = 's32[1]{0}', space=sflag, size = 0x4, scoped, tag = 'scoped memory for tpu_custom_call.1']
    %14 = vsyncpa [#allocation3], 0
    %15 = vsyncpa [#allocation5], 0
    %16 = vsyncpa [#allocation8], 0
    %17 = vsyncpa [#allocation11], 0
    // Predicated region
    $region2: #{tpu_custom_call.1} parent=1 // pred_check
      _
    $region3: #{tpu_custom_call.1} parent=1 // pred_check_branch
      %19 = sbr.rel (0) target = $region5
    $region4: #{tpu_custom_call.1} parent=1 // pred_region
      %21 = vsyncadd [#allocation3], 0
      %s22 = sshll.u32 %s0, 4
      %s23 = int_to_ptr.hbm [resolvable:$true] %s22
      %s24 = sshll.u32 [#allocation2], 4
      %s25 = int_to_ptr.vmem [resolvable:$true] %s24
      %30 = dma.hbm_to_vmem [thread:$0]  %s23, 256, %s25, [#allocation3], 128, 128, 8
    $region5: #{tpu_custom_call.1} parent=1 // pred_fallthru
      _
    // Predicated region
    $region6: #{tpu_custom_call.1} parent=1 // pred_check
      _
    $region7: #{tpu_custom_call.1} parent=1 // pred_check_branch
      %32 = sbr.rel (0) target = $region9
    $region8: #{tpu_custom_call.1} parent=1 // pred_region
      %34 = vsyncadd [#allocation5], 0
      %s35 = sshll.u32 %s1, 4
      %s36 = int_to_ptr.hbm [resolvable:$true] %s35
      %s37 = sshll.u32 [#allocation4], 4
      %s38 = int_to_ptr.vmem [resolvable:$true] %s37
      %43 = dma.hbm_to_vmem [thread:$0]  %s36, 512, %s38, [#allocation5], 128, 128, 8
    $region9: #{tpu_custom_call.1} parent=1 // pred_fallthru
      _
    // Predicated region
    $region10: #{tpu_custom_call.1} parent=1 // pred_check
      _
    $region11: #{tpu_custom_call.1} parent=1 // pred_check_branch
      %45 = sbr.rel (0) target = $region13
    $region12: #{tpu_custom_call.1} parent=1 // pred_region
      %47 = vsyncadd [#allocation5], 0
      %s49 = sshll.u32 %s2, 4
      %s50 = int_to_ptr.hbm [resolvable:$true] %s49
      %s51 = sshll.u32 [#allocation6], 4
      %s52 = int_to_ptr.vmem [resolvable:$true] %s51
      %54 = dma.hbm_to_vmem [thread:$0]  %s50, 32, %s52, [#allocation5]
    $region13: #{tpu_custom_call.1} parent=1 // pred_fallthru
      _
    // Predicated region
    $region14: #{tpu_custom_call.1} parent=1 // pred_check
      _
    $region15: #{tpu_custom_call.1} parent=1 // pred_check_branch
      %56 = sbr.rel (0) target = $region17
    $region16: #{tpu_custom_call.1} parent=1 // pred_region
      %58 = vsyncadd [#allocation8], 0
      %s59 = sshll.u32 %s3, 4
      %s60 = int_to_ptr.hbm [resolvable:$true] %s59
      %s61 = sshll.u32 [#allocation7], 4
      %s62 = int_to_ptr.vmem [resolvable:$true] %s61
      %67 = dma.hbm_to_vmem [thread:$0]  %s60, 2048, %s62, [#allocation8], 64, 64, 4
    $region17: #{tpu_custom_call.1} parent=1 // pred_fallthru
      _
    // Predicated region
    $region18: #{tpu_custom_call.1} parent=1 // pred_check
      _
    $region19: #{tpu_custom_call.1} parent=1 // pred_check_branch
      %69 = sbr.rel (0) target = $region21
    $region20: #{tpu_custom_call.1} parent=1 // pred_region
      _
    $region21: #{tpu_custom_call.1} parent=1 // pred_fallthru
      _
    // Predicated region
    $region22: #{tpu_custom_call.1} parent=1 // pred_check
      _
    $region23: #{tpu_custom_call.1} parent=1 // pred_check_branch
      %71 = sbr.rel (0) target = $region25
    $region24: #{tpu_custom_call.1} parent=1 // pred_region
      %73 = vsyncadd [#allocation8], 0
      %s74 = sshll.u32 %s5, 4
      %s75 = int_to_ptr.hbm [resolvable:$true] %s74
      %s76 = sshll.u32 [#allocation9], 4
      %s77 = int_to_ptr.vmem [resolvable:$true] %s76
      %82 = dma.hbm_to_vmem [thread:$0]  %s75, 1024, %s77, [#allocation8], 64, 64, 4
    $region25: #{tpu_custom_call.1} parent=1 // pred_fallthru
      _
    // Predicated region
    $region26: #{tpu_custom_call.1} parent=1 // pred_check
      _
    $region27: #{tpu_custom_call.1} parent=1 // pred_check_branch
      %84 = sbr.rel (0) target = $region29
    $region28: #{tpu_custom_call.1} parent=1 // pred_region
      _
    $region29: #{tpu_custom_call.1} parent=1 // pred_fallthru
      _
    // Predicated region
    $region30: #{tpu_custom_call.1} parent=1 // pred_check
      _
    $region31: #{tpu_custom_call.1} parent=1 // pred_check_branch
      %86 = sbr.rel (0) target = $region33
    $region32: #{tpu_custom_call.1} parent=1 // pred_region
      %88 = vsyncadd [#allocation11], 0
      %s89 = sshll.u32 %s7, 4
      %s90 = int_to_ptr.hbm [resolvable:$true] %s89
      %s91 = sshll.u32 [#allocation10], 4
      %s92 = int_to_ptr.vmem [resolvable:$true] %s91
      %97 = dma.hbm_to_vmem [thread:$0]  %s90, 1024, %s92, [#allocation11], 64, 64, 4
    $region33: #{tpu_custom_call.1} parent=1 // pred_fallthru
      _
    // Predicated region
    $region34: #{tpu_custom_call.1} parent=1 // pred_check
      _
    $region35: #{tpu_custom_call.1} parent=1 // pred_check_branch
      %99 = sbr.rel (0) target = $region37
    $region36: #{tpu_custom_call.1} parent=1 // pred_region
      _
    $region37: #{tpu_custom_call.1} parent=1 // pred_fallthru
      _
    // Predicated region
    $region38: #{tpu_custom_call.1} parent=1 // pred_check
      _
    $region39: #{tpu_custom_call.1} parent=1 // pred_check_branch
      %101 = sbr.rel (0) target = $region41
    $region40: #{tpu_custom_call.1} parent=1 // pred_region
      %103 = dma.done [#allocation3], 256
    $region41: #{tpu_custom_call.1} parent=1 // pred_fallthru
      _
    // Predicated region
    $region42: #{tpu_custom_call.1} parent=1 // pred_check
      _
    $region43: #{tpu_custom_call.1} parent=1 // pred_check_branch
      %105 = sbr.rel (0) target = $region45
    $region44: #{tpu_custom_call.1} parent=1 // pred_region
      %107 = dma.done [#allocation5], 512
    $region45: #{tpu_custom_call.1} parent=1 // pred_fallthru
      _
    // Predicated region
    $region46: #{tpu_custom_call.1} parent=1 // pred_check
      _
    $region47: #{tpu_custom_call.1} parent=1 // pred_check_branch
      %109 = sbr.rel (0) target = $region49
    $region48: #{tpu_custom_call.1} parent=1 // pred_region
      %111 = dma.done [#allocation5], 32
    $region49: #{tpu_custom_call.1} parent=1 // pred_fallthru
      _
    // Predicated region
    $region50: #{tpu_custom_call.1} parent=1 // pred_check
      _
    $region51: #{tpu_custom_call.1} parent=1 // pred_check_branch
      %113 = sbr.rel (0) target = $region53
    $region52: #{tpu_custom_call.1} parent=1 // pred_region
      %115 = dma.done [#allocation8], 2048
    $region53: #{tpu_custom_call.1} parent=1 // pred_fallthru
      _
    // Predicated region
    $region54: #{tpu_custom_call.1} parent=1 // pred_check
      _
    $region55: #{tpu_custom_call.1} parent=1 // pred_check_branch
      %117 = sbr.rel (0) target = $region57
    $region56: #{tpu_custom_call.1} parent=1 // pred_region
      %119 = dma.done [#allocation8], 1024
    $region57: #{tpu_custom_call.1} parent=1 // pred_fallthru
      _
    // Predicated region
    $region58: #{tpu_custom_call.1} parent=1 // pred_check
      _
    $region59: #{tpu_custom_call.1} parent=1 // pred_check_branch
      %121 = sbr.rel (0) target = $region61
    $region60: #{tpu_custom_call.1} parent=1 // pred_region
      %123 = dma.done [#allocation11], 1024
    $region61: #{tpu_custom_call.1} parent=1 // pred_fallthru
      _
    %v125 = vld [vmem:[#allocation2] sm:$0xff]
    %v126 = vld [vmem:[#allocation2 + $0x8] sm:$0xff]
    %v127 = vpack.c.bf16 %v126, %v125
    %v128 = vld [vmem:[#allocation4] sm:$0xff]
    %v129 = vld [vmem:[#allocation4 + $0x8] sm:$0xff]
    %v130 = vld [vmem:[#allocation4 + $0x10] sm:$0xff]
    %v131 = vld [vmem:[#allocation4 + $0x18] sm:$0xff]
    %v132 = vld [vmem:[#allocation6] sm:$0x3]
    %v134 = vperm.slane %v132, 0
    %v135 = vperm.slane %v132, 1
    %v142 = vunpack.c.l.b16 %v128
    %v143 = vunpack.c.h.b16 %v128
    %v144 = vunpack.c.l.b16 %v129
    %v145 = vunpack.c.h.b16 %v129
    %v146 = vunpack.c.l.b16 %v130
    %v147 = vunpack.c.h.b16 %v130
    %v148 = vunpack.c.l.b16 %v131
    %v149 = vunpack.c.h.b16 %v131
    %v150 = vpack.c.b16 %v144, %v142
    %v151 = vpack.c.b16 %v145, %v143
    %v152 = vpack.c.b16 %v148, %v146
    %v153 = vpack.c.b16 %v149, %v147
    %vm158 = vcmask 261120
    %v160 = vsel %vm158, %v127, 0
    %162 = vmatpush.bf16.msra.mxu0 0
    %163 = vmatpush.bf16.msra.mxu0 0
    %164 = vmatpush.bf16.msra.mxu0 0
    %165 = vmatpush.bf16.msra.mxu0 0
    %166 = vmatpush.bf16.msra.mxu0 0
    %167 = vmatpush.bf16.msra.mxu0 0
    %168 = vmatpush.bf16.msra.mxu0 %v152
    %169 = vmatpush.bf16.msra.mxu0 %v150
    %170 = vmatmul.bf16.gmra.mxu0 %v160
    %v171 = vpop.f32.mrf.mxu0
    %v172 = vadd.f32 %v134, %v171
    %v173 = vpop.f32.mrf.mxu0
    %v174 = vadd.f32 %v134, %v173
    %175 = vdwg.mxu0
    %176 = vmatpush.bf16.msra.mxu0 0
    %177 = vmatpush.bf16.msra.mxu0 0
    %178 = vmatpush.bf16.msra.mxu0 0
    %179 = vmatpush.bf16.msra.mxu0 0
    %180 = vmatpush.bf16.msra.mxu0 0
    %181 = vmatpush.bf16.msra.mxu0 0
    %182 = vmatpush.bf16.msra.mxu0 %v153
    %183 = vmatpush.bf16.msra.mxu0 %v151
    %184 = vmatmul.bf16.gmra.mxu0 %v160
    %v185 = vpop.f32.mrf.mxu0
    %v186 = vadd.f32 %v135, %v185
    %v187 = vpop.f32.mrf.mxu0
    %v188 = vadd.f32 %v135, %v187
    %189 = vdwg.mxu0
    %v190 = vpack.c.bf16 %v174, %v172
    %v191 = vpack.c.bf16 %v188, %v186
    %v192 = vunpack.c.l.bf16 %v190
    %v193 = vunpack.c.l.bf16 %v191
    %v194 = vunpack.c.h.bf16 %v190
    %v195 = vunpack.c.h.bf16 %v191
    %v196 = vtanh.pop %v192
    %v197 = vtanh.pop %v193
    %v198 = vtanh.pop %v194
    %v199 = vtanh.pop %v195
    %v200 = vpack.c.bf16 %v198, %v196
    %v201 = vpack.c.bf16 %v199, %v197
    %v202 = vld [vmem:[#allocation7] sm:$0xf]
    %v203 = vld [vmem:[#allocation7 + $0x4] sm:$0xf]
    %v204 = vld [vmem:[#allocation7 + $0x8] sm:$0xf]
    %v205 = vld [vmem:[#allocation7 + $0xc] sm:$0xf]
    %v206 = vld [vmem:[#allocation7 + $0x10] sm:$0xf]
    %v207 = vld [vmem:[#allocation7 + $0x14] sm:$0xf]
    %v208 = vld [vmem:[#allocation7 + $0x18] sm:$0xf]
    %v209 = vld [vmem:[#allocation7 + $0x1c] sm:$0xf]
    %v210 = vld [vmem:[#allocation7 + $0x20] sm:$0xf]
    %v211 = vld [vmem:[#allocation7 + $0x24] sm:$0xf]
    %v212 = vld [vmem:[#allocation7 + $0x28] sm:$0xf]
    %v213 = vld [vmem:[#allocation7 + $0x2c] sm:$0xf]
    %v214 = vld [vmem:[#allocation7 + $0x30] sm:$0xf]
    %v215 = vld [vmem:[#allocation7 + $0x34] sm:$0xf]
    %v216 = vld [vmem:[#allocation7 + $0x38] sm:$0xf]
    %v217 = vld [vmem:[#allocation7 + $0x3c] sm:$0xf]
    %v218 = vld [vmem:[#allocation7 + $0x40] sm:$0xf]
    %v219 = vld [vmem:[#allocation7 + $0x44] sm:$0xf]
    %v220 = vld [vmem:[#allocation7 + $0x48] sm:$0xf]
    %v221 = vld [vmem:[#allocation7 + $0x4c] sm:$0xf]
    %v222 = vld [vmem:[#allocation7 + $0x50] sm:$0xf]
    %v223 = vld [vmem:[#allocation7 + $0x54] sm:$0xf]
    %v224 = vld [vmem:[#allocation7 + $0x58] sm:$0xf]
    %v225 = vld [vmem:[#allocation7 + $0x5c] sm:$0xf]
    %v226 = vld [vmem:[#allocation7 + $0x60] sm:$0xf]
    %v227 = vld [vmem:[#allocation7 + $0x64] sm:$0xf]
    %v228 = vld [vmem:[#allocation7 + $0x68] sm:$0xf]
    %v229 = vld [vmem:[#allocation7 + $0x6c] sm:$0xf]
    %v230 = vld [vmem:[#allocation7 + $0x70] sm:$0xf]
    %v231 = vld [vmem:[#allocation7 + $0x74] sm:$0xf]
    %v232 = vld [vmem:[#allocation7 + $0x78] sm:$0xf]
    %v233 = vld [vmem:[#allocation7 + $0x7c] sm:$0xf]
    %v234 = vld [vmem:[%s4] sm:$0x1]
    %v236 = vperm.slane %v234, 0
    %v270 = vunpack.c.l.b16 %v202
    %v271 = vunpack.c.l.b16 %v203
    %v272 = vunpack.c.l.b16 %v204
    %v273 = vunpack.c.l.b16 %v205
    %v274 = vunpack.c.l.b16 %v206
    %v275 = vunpack.c.l.b16 %v207
    %v276 = vunpack.c.l.b16 %v208
    %v277 = vunpack.c.l.b16 %v209
    %v278 = vunpack.c.l.b16 %v210
    %v279 = vunpack.c.l.b16 %v211
    %v280 = vunpack.c.l.b16 %v212
    %v281 = vunpack.c.l.b16 %v213
    %v282 = vunpack.c.l.b16 %v214
    %v283 = vunpack.c.l.b16 %v215
    %v284 = vunpack.c.l.b16 %v216
    %v285 = vunpack.c.l.b16 %v217
    %v286 = vunpack.c.l.b16 %v218
    %v287 = vunpack.c.l.b16 %v219
    %v288 = vunpack.c.l.b16 %v220
    %v289 = vunpack.c.l.b16 %v221
    %v290 = vunpack.c.l.b16 %v222
    %v291 = vunpack.c.l.b16 %v223
    %v292 = vunpack.c.l.b16 %v224
    %v293 = vunpack.c.l.b16 %v225
    %v294 = vunpack.c.l.b16 %v226
    %v295 = vunpack.c.l.b16 %v227
    %v296 = vunpack.c.l.b16 %v228
    %v297 = vunpack.c.l.b16 %v229
    %v298 = vunpack.c.l.b16 %v230
    %v299 = vunpack.c.l.b16 %v231
    %v300 = vunpack.c.l.b16 %v232
    %v301 = vunpack.c.l.b16 %v233
    %v302 = vpack.c.b16 %v271, %v270
    %v303 = vpack.c.b16 %v273, %v272
    %v304 = vpack.c.b16 %v275, %v274
    %v305 = vpack.c.b16 %v277, %v276
    %v306 = vpack.c.b16 %v279, %v278
    %v307 = vpack.c.b16 %v281, %v280
    %v308 = vpack.c.b16 %v283, %v282
    %v309 = vpack.c.b16 %v285, %v284
    %v310 = vpack.c.b16 %v287, %v286
    %v311 = vpack.c.b16 %v289, %v288
    %v312 = vpack.c.b16 %v291, %v290
    %v313 = vpack.c.b16 %v293, %v292
    %v314 = vpack.c.b16 %v295, %v294
    %v315 = vpack.c.b16 %v297, %v296
    %v316 = vpack.c.b16 %v299, %v298
    %v317 = vpack.c.b16 %v301, %v300
    %334 = vmatpush.bf16.msra.mxu0 %v309
    %335 = vmatpush.bf16.msra.mxu0 %v308
    %336 = vmatpush.bf16.msra.mxu0 %v307
    %337 = vmatpush.bf16.msra.mxu0 %v306
    %338 = vmatpush.bf16.msra.mxu0 %v305
    %339 = vmatpush.bf16.msra.mxu0 %v304
    %340 = vmatpush.bf16.msra.mxu0 %v303
    %341 = vmatpush.bf16.msra.mxu0 %v302
    %342 = vmatmul.bf16.gmra.mxu0 %v200
    %v343 = vpop.f32.mrf.mxu0
    %v344 = vadd.f32 %v236, %v343
    %v345 = vpop.f32.mrf.mxu0
    %v346 = vadd.f32 %v236, %v345
    %347 = vdwg.mxu0
    %348 = vmatpush.bf16.msra.mxu0 %v317
    %349 = vmatpush.bf16.msra.mxu0 %v316
    %350 = vmatpush.bf16.msra.mxu0 %v315
    %351 = vmatpush.bf16.msra.mxu0 %v314
    %352 = vmatpush.bf16.msra.mxu0 %v313
    %353 = vmatpush.bf16.msra.mxu0 %v312
    %354 = vmatpush.bf16.msra.mxu0 %v311
    %355 = vmatpush.bf16.msra.mxu0 %v310
    %356 = vmatmul.bf16.gmra.mxu0 %v201
    %v357 = vpop.f32.mrf.mxu0
    %v358 = vadd.f32 %v344, %v357
    %v359 = vpop.f32.mrf.mxu0
    %v360 = vadd.f32 %v346, %v359
    %361 = vdwg.mxu0
    %v362 = vpack.c.bf16 %v360, %v358
    %v363 = vunpack.c.l.bf16 %v362
    %v364 = vunpack.c.h.bf16 %v362
    %v365 = vtanh.pop %v363
    %v366 = vtanh.pop %v364
    %v367 = vpack.c.bf16 %v366, %v365
    %v368 = vld [vmem:[#allocation9] sm:$0xf]
    %v369 = vld [vmem:[#allocation9 + $0x4] sm:$0xf]
    %v370 = vld [vmem:[#allocation9 + $0x8] sm:$0xf]
    %v371 = vld [vmem:[#allocation9 + $0xc] sm:$0xf]
    %v372 = vld [vmem:[#allocation9 + $0x10] sm:$0xf]
    %v373 = vld [vmem:[#allocation9 + $0x14] sm:$0xf]
    %v374 = vld [vmem:[#allocation9 + $0x18] sm:$0xf]
    %v375 = vld [vmem:[#allocation9 + $0x1c] sm:$0xf]
    %v376 = vld [vmem:[#allocation9 + $0x20] sm:$0xf]
    %v377 = vld [vmem:[#allocation9 + $0x24] sm:$0xf]
    %v378 = vld [vmem:[#allocation9 + $0x28] sm:$0xf]
    %v379 = vld [vmem:[#allocation9 + $0x2c] sm:$0xf]
    %v380 = vld [vmem:[#allocation9 + $0x30] sm:$0xf]
    %v381 = vld [vmem:[#allocation9 + $0x34] sm:$0xf]
    %v382 = vld [vmem:[#allocation9 + $0x38] sm:$0xf]
    %v383 = vld [vmem:[#allocation9 + $0x3c] sm:$0xf]
    %v384 = vld [vmem:[%s6] sm:$0x1]
    %v386 = vperm.slane %v384, 0
    %v404 = vunpack.c.l.b16 %v368
    %v405 = vunpack.c.l.b16 %v369
    %v406 = vunpack.c.l.b16 %v370
    %v407 = vunpack.c.l.b16 %v371
    %v408 = vunpack.c.l.b16 %v372
    %v409 = vunpack.c.l.b16 %v373
    %v410 = vunpack.c.l.b16 %v374
    %v411 = vunpack.c.l.b16 %v375
    %v412 = vunpack.c.l.b16 %v376
    %v413 = vunpack.c.l.b16 %v377
    %v414 = vunpack.c.l.b16 %v378
    %v415 = vunpack.c.l.b16 %v379
    %v416 = vunpack.c.l.b16 %v380
    %v417 = vunpack.c.l.b16 %v381
    %v418 = vunpack.c.l.b16 %v382
    %v419 = vunpack.c.l.b16 %v383
    %v420 = vpack.c.b16 %v405, %v404
    %v421 = vpack.c.b16 %v407, %v406
    %v422 = vpack.c.b16 %v409, %v408
    %v423 = vpack.c.b16 %v411, %v410
    %v424 = vpack.c.b16 %v413, %v412
    %v425 = vpack.c.b16 %v415, %v414
    %v426 = vpack.c.b16 %v417, %v416
    %v427 = vpack.c.b16 %v419, %v418
    %436 = vmatpush.bf16.msra.mxu0 %v427
    %437 = vmatpush.bf16.msra.mxu0 %v426
    %438 = vmatpush.bf16.msra.mxu0 %v425
    %439 = vmatpush.bf16.msra.mxu0 %v424
    %440 = vmatpush.bf16.msra.mxu0 %v423
    %441 = vmatpush.bf16.msra.mxu0 %v422
    %442 = vmatpush.bf16.msra.mxu0 %v421
    %443 = vmatpush.bf16.msra.mxu0 %v420
    %444 = vmatmul.bf16.gmra.mxu0 %v367
    %v445 = vpop.f32.mrf.mxu0
    %v446 = vadd.f32 %v386, %v445
    %v447 = vpop.f32.mrf.mxu0
    %v448 = vadd.f32 %v386, %v447
    %449 = vdwg.mxu0
    %v450 = vpack.c.bf16 %v448, %v446
    %v451 = vunpack.c.l.bf16 %v450
    %v452 = vunpack.c.h.bf16 %v450
    %v453 = vtanh.pop %v451
    %v454 = vtanh.pop %v452
    %v455 = vpack.c.bf16 %v454, %v453
    %v456 = vld [vmem:[#allocation10] sm:$0xf]
    %v457 = vld [vmem:[#allocation10 + $0x4] sm:$0xf]
    %v458 = vld [vmem:[#allocation10 + $0x8] sm:$0xf]
    %v459 = vld [vmem:[#allocation10 + $0xc] sm:$0xf]
    %v460 = vld [vmem:[#allocation10 + $0x10] sm:$0xf]
    %v461 = vld [vmem:[#allocation10 + $0x14] sm:$0xf]
    %v462 = vld [vmem:[#allocation10 + $0x18] sm:$0xf]
    %v463 = vld [vmem:[#allocation10 + $0x1c] sm:$0xf]
    %v464 = vld [vmem:[#allocation10 + $0x20] sm:$0xf]
    %v465 = vld [vmem:[#allocation10 + $0x24] sm:$0xf]
    %v466 = vld [vmem:[#allocation10 + $0x28] sm:$0xf]
    %v467 = vld [vmem:[#allocation10 + $0x2c] sm:$0xf]
    %v468 = vld [vmem:[#allocation10 + $0x30] sm:$0xf]
    %v469 = vld [vmem:[#allocation10 + $0x34] sm:$0xf]
    %v470 = vld [vmem:[#allocation10 + $0x38] sm:$0xf]
    %v471 = vld [vmem:[#allocation10 + $0x3c] sm:$0xf]
    %v472 = vld [vmem:[%s8] sm:$0x1]
    %v474 = vperm.slane %v472, 0
    %v492 = vunpack.c.l.b16 %v456
    %v493 = vunpack.c.l.b16 %v457
    %v494 = vunpack.c.l.b16 %v458
    %v495 = vunpack.c.l.b16 %v459
    %v496 = vunpack.c.l.b16 %v460
    %v497 = vunpack.c.l.b16 %v461
    %v498 = vunpack.c.l.b16 %v462
    %v499 = vunpack.c.l.b16 %v463
    %v500 = vunpack.c.l.b16 %v464
    %v501 = vunpack.c.l.b16 %v465
    %v502 = vunpack.c.l.b16 %v466
    %v503 = vunpack.c.l.b16 %v467
    %v504 = vunpack.c.l.b16 %v468
    %v505 = vunpack.c.l.b16 %v469
    %v506 = vunpack.c.l.b16 %v470
    %v507 = vunpack.c.l.b16 %v471
    %v508 = vpack.c.b16 %v493, %v492
    %v509 = vpack.c.b16 %v495, %v494
    %v510 = vpack.c.b16 %v497, %v496
    %v511 = vpack.c.b16 %v499, %v498
    %v512 = vpack.c.b16 %v501, %v500
    %v513 = vpack.c.b16 %v503, %v502
    %v514 = vpack.c.b16 %v505, %v504
    %v515 = vpack.c.b16 %v507, %v506
    %524 = vmatpush.bf16.msra.mxu0 %v515
    %525 = vmatpush.bf16.msra.mxu0 %v514
    %526 = vmatpush.bf16.msra.mxu0 %v513
    %527 = vmatpush.bf16.msra.mxu0 %v512
    %528 = vmatpush.bf16.msra.mxu0 %v511
    %529 = vmatpush.bf16.msra.mxu0 %v510
    %530 = vmatpush.bf16.msra.mxu0 %v509
    %531 = vmatpush.bf16.msra.mxu0 %v508
    %532 = vmatmul.bf16.gmra.mxu0 %v455
    %v533 = vpop.f32.mrf.mxu0
    %v534 = vadd.f32 %v474, %v533
    %v535 = vpop.f32.mrf.mxu0
    %v536 = vadd.f32 %v474, %v535
    %537 = vdwg.mxu0
    %vm538 = vcmask 15360
    %539 = vst.msk [vmem:[%s9] sm:$0xff] %vm538, %v534
    %540 = vst.msk [vmem:[%s9 + $0x8] sm:$0xff] %vm538, %v536
    // Predicated region
    $region62: #{tpu_custom_call.1} parent=1 // pred_check
      _
    $region63: #{tpu_custom_call.1} parent=1 // pred_check_branch
      %542 = sbr.rel (0) target = $region65
    $region64: #{tpu_custom_call.1} parent=1 // pred_region
      _
    $region65: #{tpu_custom_call.1} parent=1 // pred_fallthru
      _
    // Predicated region
    $region66: #{tpu_custom_call.1} parent=1 // pred_check
      _
    $region67: #{tpu_custom_call.1} parent=1 // pred_check_branch
      %544 = sbr.rel (0) target = $region69
    $region68: #{tpu_custom_call.1} parent=1 // pred_region
      _
    $region69: #{tpu_custom_call.1} parent=1 // pred_fallthru
      _
    %545 = vsyncpa [#allocation3], 1
    %546 = vsyncpa [#allocation5], 1
    %547 = vsyncpa [#allocation8], 1
    %548 = vsyncpa [#allocation11], 1

</llo_original>
